<compile_context>
chip_gen: v7x
topology: tpu7x:2x2x1
jax: 0.10.0
libtpu: 0.0.40
codegen_flags: <defaults>
</compile_context>

<pallas_src>
import functools

import jax
import jax.numpy as jnp
from jax import lax
from jax.experimental import pallas as pl
from jax.experimental.pallas import tpu as pltpu


def _round_up(v: int, m: int) -> int:
    return ((v + m - 1) // m) * m


def _round_down(v: int, m: int) -> int:
    return (v // m) * m


def _gem_kernel(x_ref, o_ref, *, p, eps, inv_hw):
    """One (TILE_NC, HW) input tile -> (TILE_NC, 1) pooled output tile."""
    p_int = int(p)
    p_is_int = float(p_int) == float(p)
    in_dtype = x_ref.dtype
    low_precision_float = (
        jnp.issubdtype(in_dtype, jnp.floating) and jnp.dtype(in_dtype).itemsize < 4
    )

    if low_precision_float and p_is_int and p_int >= 2:
        # bf16/f16 fast path: clamp and the first multiply stay packed
        # (2 elems/lane) in the input dtype; widen once; the remaining
        # multiplies and the row accumulation run in f32.
        xc = jnp.maximum(x_ref[...], jnp.asarray(eps, in_dtype))
        x2 = (xc * xc).astype(jnp.float32)
        if p_int == 2:
            xp = x2
        else:
            xp = x2 * lax.integer_pow(xc.astype(jnp.float32), p_int - 2)
    else:
        x = jnp.maximum(x_ref[...].astype(jnp.float32), eps)  # clamp(min=eps)
        # Integral p (the common p=3 case) -> VPU multiplies instead of the
        # EUP exp/log chain of float pow.
        if p_is_int and p_int >= 1:
            xp = lax.integer_pow(x, p_int)
        else:
            xp = x ** p

    # sum * (1/HW) instead of jnp.mean: keeps the per-row divide off the EUP.
    m = jnp.sum(xp, axis=-1, keepdims=True) * inv_hw  # (TILE_NC, 1)

    # Final root only touches TILE_NC elements -> negligible EUP work.
    root = m if p == 1.0 else m ** (1.0 / p)
    o_ref[...] = root.astype(o_ref.dtype)


def _vmem_capacity_bytes() -> int:
    """Generation-aware VMEM capacity (64 MiB v7x, 128 MiB v5e/v6e)."""
    try:
        return int(pltpu.get_tpu_info().vmem_capacity_bytes)
    except Exception:
        return 64 * 1024 * 1024  # conservative fallback (v7x per-TC size)


_MIN_GRID_STEPS = 8                           # keep >=8 steps for v7x megacore + pipelining
_TARGET_INPUT_BUF_BYTES = 8 * 1024 * 1024     # per-input-buffer sweet spot (returns plateau past this)
_MIN_TILE_BYTES = 512 * 1024                  # below this, per-step overhead / small DMAs dominate
_VMEM_HEADROOM = 3 * 1024 * 1024


def _pick_tiling(nc: int, hw: int, itemsize: int):
    """Pick (tile_nc, vmem_limit_bytes, n_input_buffers)."""
    sublane = 8 * max(1, 4 // max(1, itemsize))   # 8 (f32) / 16 (bf16) / 32 (int8)
    row_bytes = max(1, hw * itemsize)

    vmem_cap = _vmem_capacity_bytes()
    # ~32 MiB scoped on v7x (64 MiB physical), ~48 MiB on v5e/v6e (128 MiB physical).
    vmem_limit = min(vmem_cap // 2, 48 * 1024 * 1024)

    n_buf = 3  # triple-buffered input: compute per step is tiny, DMA is the exposed cost.
    # The narrow (tile, 1) output is lane-padded to 128 in VMEM and double
    # buffered (~2 * 128 * 4 bytes per row); account for it in the budget.
    out_bytes_per_row = 2 * 128 * max(4, itemsize)
    per_row_bytes = n_buf * row_bytes + out_bytes_per_row

    rows_budget = max(
        sublane, _round_down(max(0, vmem_limit - _VMEM_HEADROOM) // per_row_bytes, sublane))
    rows_target = max(sublane, _round_down(_TARGET_INPUT_BUF_BYTES // row_bytes, sublane))
    rows_floor = max(sublane, _round_down(_MIN_TILE_BYTES // row_bytes, sublane))
    rows_steps = _round_up(max(1, -(-nc // _MIN_GRID_STEPS)), sublane)

    tile = min(rows_budget, rows_target)            # byte-sized tile, no fixed row cap
    tile = min(tile, max(rows_steps, rows_floor))   # >= ~8 grid steps when NC is large
    tile = min(tile, _round_up(nc, sublane))        # no bigger than the (padded) problem
    # TODO(synk): if a single sublane-row group exceeded the VMEM budget
    # (absurdly large H*W), the HW axis itself would need tiling + accumulation;
    # not a realistic GeM feature-map shape, so not implemented.
    return max(tile, sublane), vmem_limit, n_buf


def gem(x, p=3.0, eps=1e-6, *, tile_nc=None):
    """x: (N, C, H, W) array. Returns (N, C, 1, 1), matching F.avg_pool2d-based GeM."""
    n, c, h, w = x.shape
    nc, hw = n * c, h * w
    x2d = x.reshape(nc, hw)  # free, row-major reshape

    itemsize = jnp.dtype(x.dtype).itemsize
    auto_tile, vmem_limit, n_buf = _pick_tiling(nc, hw, itemsize)
    if tile_nc is None:
        tile_nc = auto_tile

    num_steps = -(-nc // tile_nc)
    grid = (num_steps,)

    # TODO(synk): for HW that is not a multiple of 128 (e.g. 7x7 / 14x14 maps)
    # only HW/128 of each vreg's lanes carry data and the HBM->VMEM DMA scatters
    # short rows into padded (8,128) tiles.  Packing k rows per lane-row
    # (k*HW % 128 == 0) would densify the DMA, but the in-kernel segmented
    # reduction it requires costs roughly a full relayout pass over the tile,
    # which can negate the win; a channels-last formulation only pays off if
    # NHWC is already the producer layout.  Left as the padded layout.

    in_spec_kwargs = {}
    if num_steps >= 3:
        # Third input buffer hides the per-step DMA issue/wait bubble
        # (the VMEM budget in _pick_tiling already assumes 3 input buffers).
        in_spec_kwargs["pipeline_mode"] = pl.Buffered(n_buf)
    in_spec = pl.BlockSpec((tile_nc, hw), lambda i: (i, 0), **in_spec_kwargs)

    out = pl.pallas_call(
        functools.partial(
            _gem_kernel, p=float(p), eps=float(eps), inv_hw=1.0 / float(hw)),
        out_shape=jax.ShapeDtypeStruct((nc, 1), x.dtype),
        grid_spec=pltpu.PrefetchScalarGridSpec(
            num_scalar_prefetch=0,
            grid=grid,
            in_specs=[in_spec],
            out_specs=pl.BlockSpec((tile_nc, 1), lambda i: (i, 0)),
        ),
        compiler_params=pltpu.CompilerParams(
            # NC tiles are independent: shard across TensorCores on v7x.
            dimension_semantics=("parallel",),
            vmem_limit_bytes=int(vmem_limit),
        ),
    )(x2d)

    return out.reshape(n, c, 1, 1)


class GeM:
    """Mirror of the PyTorch GeM module (forward only)."""

    def __init__(self, p=3, eps=1e-6, p_trainable=False):
        # TODO(synk): p_trainable=True in torch makes p a 1-element Parameter;
        # forward math is identical, so p is kept as a static scalar here
        # (no gradient w.r.t. p).
        self.p = float(p)
        self.eps = float(eps)

    def __call__(self, x):
        return gem(x, p=self.p, eps=self.eps)


if __name__ == "__main__":
    def ref_gem(x, p=3.0, eps=1e-6):
        xf = x.astype(jnp.float32)
        return jnp.mean(jnp.maximum(xf, eps) ** p, axis=(2, 3), keepdims=True) ** (1.0 / p)

    # 1) Default path: auto tiling, single grid step.
    key = jax.random.PRNGKey(0)
    n, c, h, w = 2, 4, 16, 16
    x = jax.random.normal(key, (n, c, h, w), dtype=jnp.float32)
    y = jax.block_until_ready(GeM(p=3, eps=1e-6, p_trainable=False)(x))
    assert y.shape == (n, c, 1, 1)
    assert jnp.allclose(y, ref_gem(x), rtol=1e-5, atol=1e-6)

    # 2) Partial final NC tile (nc=15 with a forced tile of 8): exercises the
    #    masked output-write path flagged in the review.
    x2 = jax.random.normal(jax.random.PRNGKey(1), (3, 5, 16, 16), dtype=jnp.float32)
    y2 = jax.block_until_ready(gem(x2, p=3.0, eps=1e-6, tile_nc=8))
    assert y2.shape == (3, 5, 1, 1)
    assert jnp.allclose(y2, ref_gem(x2), rtol=1e-5, atol=1e-6)

    # 3) Multi-step grid (4 steps) so the Buffered(3) input pipeline is exercised.
    x3 = jax.random.normal(jax.random.PRNGKey(2), (2, 16, 8, 16), dtype=jnp.float32)
    y3 = jax.block_until_ready(gem(x3, p=3.0, eps=1e-6, tile_nc=8))
    assert y3.shape == (2, 16, 1, 1)
    assert jnp.allclose(y3, ref_gem(x3), rtol=1e-5, atol=1e-6)

    # 4) bf16 input: exercises the packed-precision clamp / x*x fast path.
    x4 = jax.random.normal(jax.random.PRNGKey(3), (2, 16, 8, 8), dtype=jnp.bfloat16)
    y4 = jax.block_until_ready(gem(x4, p=3.0, eps=1e-6))
    assert y4.shape == (2, 16, 1, 1)
    assert jnp.allclose(y4.astype(jnp.float32), ref_gem(x4), rtol=2e-2, atol=2e-2)

    print("KERNEL_OK")
</pallas_src>

<mosaic_0001>
module attributes {stable_mosaic.version = 11 : i64} {
  func.func @_gem_kernel(%arg0: i32, %arg1: memref<8x256xf32, #tpu.memory_space<vmem>>, %arg2: memref<8x1xf32, #tpu.memory_space<vmem>>) attributes {dimension_semantics = [#tpu.dimension_semantics<parallel>], iteration_bounds = array<i64: 1>, scalar_prefetch = 0 : i64, scratch_operands = 0 : i64, tpu.core_type = #tpu.core_type<tc>, window_params = [{transform_indices = @transform_0, window_bounds = array<i64: 8, 256>}, {transform_indices = @transform_1, window_bounds = array<i64: 8, 1>}]} {
    %c0 = arith.constant 0 : index
    %c0_0 = arith.constant 0 : index
    %0 = vector.load %arg1[%c0, %c0_0] : memref<8x256xf32, #tpu.memory_space<vmem>>, vector<8x256xf32>
    %cst = arith.constant 9.99999997E-7 : f32
    %1 = vector.broadcast %cst : f32 to vector<8x256xf32>
    %2 = arith.maximumf %0, %1 : vector<8x256xf32>
    %3 = arith.mulf %2, %2 : vector<8x256xf32>
    %4 = arith.mulf %2, %3 : vector<8x256xf32>
    %cst_1 = arith.constant dense<0.000000e+00> : vector<8xf32>
    %5 = vector.multi_reduction <add>, %4, %cst_1 [1] : vector<8x256xf32> to vector<8xf32>
    %6 = vector.shape_cast %5 : vector<8xf32> to vector<8x1xf32>
    %cst_2 = arith.constant 3.906250e-03 : f32
    %7 = vector.broadcast %cst_2 : f32 to vector<8x1xf32>
    %8 = arith.mulf %6, %7 : vector<8x1xf32>
    %cst_3 = arith.constant 0.333333343 : f32
    %9 = vector.broadcast %cst_3 : f32 to vector<8x1xf32>
    %10 = math.powf %8, %9 : vector<8x1xf32>
    %c0_4 = arith.constant 0 : index
    %c0_5 = arith.constant 0 : index
    %11 = vector.load %arg2[%c0_4, %c0_5] : memref<8x1xf32, #tpu.memory_space<vmem>>, vector<8x1xf32>
    tpu.vector_store %arg2[%c0_4, %c0_5], %10 {strides = array<i32>} : memref<8x1xf32, #tpu.memory_space<vmem>>, vector<8x1xf32>,
    return
  }
  func.func @transform_0(%arg0: i32) -> (i32, i32) {
    %c0_i32 = arith.constant 0 : i32
    %c0_i32_0 = arith.constant 0 : i32
    return %arg0, %c0_i32 : i32, i32
  }
  func.func @transform_1(%arg0: i32) -> (i32, i32) {
    %c0_i32 = arith.constant 0 : i32
    %c0_i32_0 = arith.constant 0 : i32
    return %arg0, %c0_i32 : i32, i32
  }
}

</mosaic_0001>

<llo_original>
// kernel: tpu_custom_call.1
$region0: #{tpu_custom_call.1}
  #allocation0 [shape = 'u32[]', space=smem, size = 0x4, offset = 0x4, fixed_abs, tag = 'smem constant byte address 0x4 - core index']
  #allocation1 [shape = 'u32[144,128]{1,0:T(1,128)}', space=vmem, size = 0x12000, scoped, tag = 'internal scratch']
  %s0 = inlined_call_operand.hbm [shape: f32[8,256], index: 0, kind: input, shape index: {}]
  %s1 = inlined_call_operand.vmem [shape: f32[8,1], index: 1, kind: output, shape index: {}]
  %s2 = sld [smem:[#allocation0]]
  $region18: #{tpu_custom_call.1} parent=0
    _
  %s4 = ssub.s32 1, %s2
  %s5 = scalar_select 0, %s4, %s2
  $region1: #{tpu_custom_call.1} parent=0
    #allocation2 [shape = 'u8[8192]{0}', space=vmem, size = 0x2000, scoped, tag = 'input window, operand 0, single buffered']
    #allocation3 [shape = 's32[1]{0}', space=sflag, size = 0x4, scoped, tag = 'scoped memory for tpu_custom_call.1']
    %6 = vsyncpa [#allocation3], 0
    // Predicated region
    $region2: #{tpu_custom_call.1} parent=1 // pred_check
      _
    $region3: #{tpu_custom_call.1} parent=1 // pred_check_branch
      %8 = sbr.rel (0) target = $region5
    $region4: #{tpu_custom_call.1} parent=1 // pred_region
      %s10 = ssub.s32 256, 256
      %11 = vsyncadd [#allocation3], %s10
      %s13 = sshll.u32 [#allocation2], 4
      %s14 = int_to_ptr.vmem [resolvable:$true] %s13
      %16 = dma.hbm_to_vmem [thread:$0]  %s0, 256, %s14, [#allocation3]
    $region5: #{tpu_custom_call.1} parent=1 // pred_fallthru
      _
    // Predicated region
    $region6: #{tpu_custom_call.1} parent=1 // pred_check
      _
    $region7: #{tpu_custom_call.1} parent=1 // pred_check_branch
      %18 = sbr.rel (0) target = $region9
    $region8: #{tpu_custom_call.1} parent=1 // pred_region
      %19 = dma.done [#allocation3], 256
    $region9: #{tpu_custom_call.1} parent=1 // pred_fallthru
      _
    %v20 = vld [vmem:[#allocation2] sm:$0xff]
    %v21 = vld [vmem:[#allocation2 + $0x8] sm:$0xff]
    %v22 = vmax.f32 %v20, 1e-06
    %v23 = vmax.f32 %v21, 1e-06
    %v24 = vmul.f32 %v22, %v22
    %v25 = vmul.f32 %v23, %v23
    %v26 = vmul.f32 %v22, %v24
    %v27 = vmul.f32 %v23, %v25
    %v28 = vadd.f32 %v26, %v27
    %29 = vadd.xlane.f32.xlu0 %v28
    %v30 = vpop.xlane.xlu0 %29
    %v31 = vmul.f32 %v30, 0.00390625
    %v32 = vpow.f32 %v31, 0.33333334
    %vm33 = vcmask 7168
    %34 = vst.msk [vmem:[%s1] sm:$0xff] %vm33, %v32
    // Predicated region
    $region10: #{tpu_custom_call.1} parent=1 // pred_check
      _
    $region11: #{tpu_custom_call.1} parent=1 // pred_check_branch
      %36 = sbr.rel (0) target = $region13
    $region12: #{tpu_custom_call.1} parent=1 // pred_region
      _
    $region13: #{tpu_custom_call.1} parent=1 // pred_fallthru
      _
    // Predicated region
    $region14: #{tpu_custom_call.1} parent=1 // pred_check
      _
    $region15: #{tpu_custom_call.1} parent=1 // pred_check_branch
      %38 = sbr.rel (0) target = $region17
    $region16: #{tpu_custom_call.1} parent=1 // pred_region
      _
    $region17: #{tpu_custom_call.1} parent=1 // pred_fallthru
      _
    %39 = vsyncpa [#allocation3], 1

</llo_original>
